<compile_context>
chip_gen: v7x
topology: tpu7x:2x2x1
jax: 0.10.0
libtpu: 0.0.40
codegen_flags: <defaults>
</compile_context>

<pallas_src>
import functools

import jax
import jax.numpy as jnp
from jax import lax
from jax.experimental import pallas as pl
from jax.experimental.pallas import tpu as pltpu


def _round_up(x, m):
    return (x + m - 1) // m * m


def _pick_tp(n_pix, kc, c8, cp, *, budget_bytes=12 << 20, tp_cap=2048):
    """Pixel tile size: multiple of 128 (lane-dense stores), sized so the
    double-buffered x / y blocks plus the f32 accumulator stay within `budget_bytes`
    of VMEM (safe on v7x's 64 MiB as well as v5e/v6e's 128 MiB)."""
    per_row = 4 * kc + 4 * c8 + 8 * cp      # bytes of VMEM per pixel row
    tp = budget_bytes // max(per_row, 1)
    tp = min(tp, tp_cap, _round_up(n_pix, 128))
    return max(128, (tp // 128) * 128)


# ----------------------------------------------------------------------------
# Kernel 1: fused-tap convolution matmul + per-tile partial BN statistics.
# ----------------------------------------------------------------------------
def _conv_stats_kernel(x_ref, w_ref, y_ref, ps_ref, *, c8):
    # x_ref : (1, Kc, TP)   bf16  fused-tap im2col tile (tap/channel-major, pixel lanes)
    # w_ref : (Cp, Kc)      bf16  reshaped conv weights (Cout zero-padded to Cp=128k)
    # y_ref : (1, C8, TP)   bf16  pre-BN conv output tile (channel-major == NCHW)
    # ps_ref: (1, 1, Cp, 2) f32   this tile's partial per-channel [sum, sum-of-squares]
    acc = jnp.dot(w_ref[...], x_ref[0], preferred_element_type=jnp.float32)  # (Cp, TP)
    # Store only the (pad-to-8) real channels: no Cp/Cout write amplification.
    y_ref[0] = acc[:c8, :].astype(y_ref.dtype)
    # BN statistics from the *bf16-rounded* values -- the exact tensor normalized later.
    y_f = acc.astype(jnp.bfloat16).astype(jnp.float32)
    ps_ref[0, 0, :, 0:1] = jnp.sum(y_f, axis=1, keepdims=True)
    ps_ref[0, 0, :, 1:2] = jnp.sum(y_f * y_f, axis=1, keepdims=True)


# ----------------------------------------------------------------------------
# Kernel 2: BatchNorm (precomputed per-channel scale/shift) + ReLU, same tiling.
# ----------------------------------------------------------------------------
def _bn_relu_kernel(y_ref, scale_ref, shift_ref, o_ref):
    # y_ref/o_ref: (1, C8, TP); scale/shift: (C8, 1) broadcast along the pixel lanes.
    y = y_ref[0].astype(jnp.float32)
    o_ref[0] = jnp.maximum(y * scale_ref[...] + shift_ref[...], 0.0).astype(o_ref.dtype)


# ----------------------------------------------------------------------------
# Wrapper: layout glue + the two pallas_calls.
# ----------------------------------------------------------------------------
def conv_block_forward(x_nchw, w_oihw, gamma, beta, *, stride=1, eps=1e-5):
    N, Cin, H, W = x_nchw.shape
    Cout, _, K, _ = w_oihw.shape
    p = K // 2
    Ho = (H + 2 * p - K) // stride + 1
    Wo = (W + 2 * p - K) // stride + 1
    n_pix = Ho * Wo
    Kc = K * K * Cin                      # fused contraction dimension
    C8 = _round_up(Cout, 8)               # sublane-padded channels for y / output
    Cp = _round_up(Cout, 128)             # lane-dense channels for the matmul operand
    TP = _pick_tp(n_pix, Kc, C8, Cp)      # pixel tile (lane axis), multiple of 128
    n_pix_p = _round_up(n_pix, TP)
    T = n_pix_p // TP

    # --- XLA glue (pure indexing, all in bf16): NCHW pad -> fused-tap im2col --------
    x_bf = x_nchw.astype(jnp.bfloat16)
    x_pad = jnp.pad(x_bf, ((0, 0), (0, 0), (p, p), (p, p)))
    taps = []
    for kh in range(K):
        for kw in range(K):
            xs = x_pad[:, :,
                       kh:kh + (Ho - 1) * stride + 1:stride,
                       kw:kw + (Wo - 1) * stride + 1:stride]      # (N, Cin, Ho, Wo)
            taps.append(xs.reshape(N, Cin, n_pix))
    x2 = jnp.concatenate(taps, axis=1)                            # (N, Kc, n_pix)
    # Zero-pad the pixel axis so it tiles evenly; zero pixels add nothing to the sums.
    x2 = jnp.pad(x2, ((0, 0), (0, 0), (0, n_pix_p - n_pix)))

    # OIHW -> (Cp, Kc): column (kh*K + kw)*Cin + ci, matching x2's axis-1 ordering.
    w2 = jnp.transpose(w_oihw, (0, 2, 3, 1)).reshape(Cout, Kc)
    w2 = jnp.pad(w2, ((0, Cp - Cout), (0, 0))).astype(jnp.bfloat16)

    y_bf16, pstats = pl.pallas_call(
        functools.partial(_conv_stats_kernel, c8=C8),
        out_shape=(
            jax.ShapeDtypeStruct((N, C8, n_pix_p), jnp.bfloat16),
            jax.ShapeDtypeStruct((N, T, Cp, 2), jnp.float32),
        ),
        grid_spec=pltpu.PrefetchScalarGridSpec(
            num_scalar_prefetch=0,
            grid=(N, T),
            in_specs=[
                pl.BlockSpec((1, Kc, TP), lambda n, t: (n, 0, t)),
                pl.BlockSpec((Cp, Kc), lambda n, t: (0, 0)),
            ],
            out_specs=[
                pl.BlockSpec((1, C8, TP), lambda n, t: (n, 0, t)),
                pl.BlockSpec((1, 1, Cp, 2), lambda n, t: (n, t, 0, 0)),
            ],
        ),
        compiler_params=pltpu.CompilerParams(
            dimension_semantics=("parallel", "parallel"),
            vmem_limit_bytes=32 * 1024 * 1024,
        ),
    )(x2, w2)

    # --- tiny per-channel glue: reduce partial stats, fold BN into scale/shift ------
    # Single-pass E[x^2]-E[x]^2 in f32 (clamped).  Fine for conv outputs where
    # |mean| ~ std; a Chan-style centered merge would be the fully robust alternative.
    stats = jnp.sum(pstats, axis=(0, 1))                          # (Cp, 2)
    count = float(N * n_pix)                                      # padded pixels add 0
    mean = stats[:C8, 0] / count
    var = jnp.maximum(stats[:C8, 1] / count - mean * mean, 0.0)   # biased (PyTorch BN)
    gamma_p = jnp.pad(gamma.astype(jnp.float32), (0, C8 - Cout))  # pad=0 -> pad chans 0
    beta_p = jnp.pad(beta.astype(jnp.float32), (0, C8 - Cout))
    scale = gamma_p * lax.rsqrt(var + eps)
    shift = beta_p - mean * scale

    out = pl.pallas_call(
        _bn_relu_kernel,
        out_shape=jax.ShapeDtypeStruct((N, C8, n_pix_p), jnp.float32),
        grid_spec=pltpu.PrefetchScalarGridSpec(
            num_scalar_prefetch=0,
            grid=(N, T),
            in_specs=[
                pl.BlockSpec((1, C8, TP), lambda n, t: (n, 0, t)),
                pl.BlockSpec((C8, 1), lambda n, t: (0, 0)),
                pl.BlockSpec((C8, 1), lambda n, t: (0, 0)),
            ],
            out_specs=pl.BlockSpec((1, C8, TP), lambda n, t: (n, 0, t)),
        ),
        compiler_params=pltpu.CompilerParams(
            dimension_semantics=("parallel", "parallel"),
            vmem_limit_bytes=32 * 1024 * 1024,
        ),
    )(y_bf16, scale.reshape(C8, 1), shift.reshape(C8, 1))

    # Channel-major output is already NCHW: just strip padding (no-op at demo shapes).
    return out[:, :Cout, :n_pix].reshape(N, Cout, Ho, Wo)


def feature_extractor_forward(x, w, gamma, beta, *, stride=1, eps=1e-5):
    """FeatureExtractor.forward: run the wrapped model, return only its features.

    The logits head of the wrapped model is discarded by FeatureExtractor, so it is
    never evaluated; the feature path is the ConvBlock above.
    """
    return conv_block_forward(x, w, gamma, beta, stride=stride, eps=eps)


# ----------------------------------------------------------------------------
# Demo + correctness checks.
# ----------------------------------------------------------------------------
if __name__ == "__main__":
    key = jax.random.PRNGKey(0)
    kx, kw, kg, kb = jax.random.split(key, 4)

    N, Cin, H, W = 2, 4, 16, 16
    Cout, K, stride = 8, 3, 1
    eps = 1e-5

    x = jax.random.normal(kx, (N, Cin, H, W), jnp.float32)
    fan_in = Cin * K * K
    bound = 1.0 / (fan_in ** 0.5)
    w = jax.random.uniform(kw, (Cout, Cin, K, K), jnp.float32, -bound, bound)
    gamma = 1.0 + 0.1 * jax.random.normal(kg, (Cout,), jnp.float32)
    beta = 0.1 * jax.random.normal(kb, (Cout,), jnp.float32)

    feat = feature_extractor_forward(x, w, gamma, beta, stride=stride, eps=eps)
    feat = jax.block_until_ready(feat)

    pad = ((K // 2, K // 2), (K // 2, K // 2))

    # Reference 1 (tight): mirrors the kernel numerics -- bf16 MXU inputs with f32
    # accumulation, BN stats taken from the bf16-rounded conv output (same tensor
    # that is normalized).
    y_acc = lax.conv_general_dilated(
        x.astype(jnp.bfloat16), w.astype(jnp.bfloat16),
        window_strides=(stride, stride), padding=pad,
        dimension_numbers=("NCHW", "OIHW", "NCHW"),
        preferred_element_type=jnp.float32)
    y_q = y_acc.astype(jnp.bfloat16).astype(jnp.float32)
    m = jnp.mean(y_q, axis=(0, 2, 3), keepdims=True)
    v = jnp.var(y_q, axis=(0, 2, 3), keepdims=True)
    ref_tight = jnp.maximum(
        (y_q - m) * lax.rsqrt(v + eps) * gamma[None, :, None, None]
        + beta[None, :, None, None], 0.0)

    # Reference 2 (semantics): exact fp32 forward of the PyTorch module; looser
    # tolerance covers the intentional bf16 MXU inputs / bf16 intermediate.
    y_f32 = lax.conv_general_dilated(
        x, w, window_strides=(stride, stride), padding=pad,
        dimension_numbers=("NCHW", "OIHW", "NCHW"),
        precision=lax.Precision.HIGHEST)
    m32 = jnp.mean(y_f32, axis=(0, 2, 3), keepdims=True)
    v32 = jnp.var(y_f32, axis=(0, 2, 3), keepdims=True)
    ref_f32 = jnp.maximum(
        (y_f32 - m32) * lax.rsqrt(v32 + eps) * gamma[None, :, None, None]
        + beta[None, :, None, None], 0.0)

    assert feat.shape == ref_f32.shape, (feat.shape, ref_f32.shape)
    err_tight = float(jnp.max(jnp.abs(feat - ref_tight)))
    err_f32 = float(jnp.max(jnp.abs(feat - ref_f32)))
    assert jnp.allclose(feat, ref_tight, rtol=1e-2, atol=1e-2), f"tight max_err={err_tight}"
    assert jnp.allclose(feat, ref_f32, rtol=2e-2, atol=2e-2), f"f32 max_err={err_f32}"
    print("KERNEL_OK")
</pallas_src>

<mosaic_0001>
module attributes {stable_mosaic.version = 11 : i64} {
  func.func @_conv_stats_kernel(%arg0: i32, %arg1: i32, %arg2: memref<1x36x256xbf16, #tpu.memory_space<vmem>>, %arg3: memref<128x36xbf16, #tpu.memory_space<vmem>>, %arg4: memref<1x8x256xbf16, #tpu.memory_space<vmem>>, %arg5: memref<1x1x128x2xf32, #tpu.memory_space<vmem>>) attributes {dimension_semantics = [#tpu.dimension_semantics<parallel>, #tpu.dimension_semantics<parallel>], iteration_bounds = array<i64: 2, 1>, scalar_prefetch = 0 : i64, scratch_operands = 0 : i64, tpu.core_type = #tpu.core_type<tc>, window_params = [{transform_indices = @transform_0, window_bounds = array<i64: 1, 36, 256>}, {pipeline_mode = #tpu.pipeline_mode<synchronous>, transform_indices = @transform_1, window_bounds = array<i64: 128, 36>}, {transform_indices = @transform_2, window_bounds = array<i64: 1, 8, 256>}, {transform_indices = @transform_3, window_bounds = array<i64: 1, 1, 128, 2>}]} {
    %c0 = arith.constant 0 : index
    %c0_0 = arith.constant 0 : index
    %0 = vector.load %arg3[%c0, %c0_0] : memref<128x36xbf16, #tpu.memory_space<vmem>>, vector<128x36xbf16>
    %c0_1 = arith.constant 0 : index
    %c0_2 = arith.constant 0 : index
    %c0_3 = arith.constant 0 : index
    %1 = vector.load %arg2[%c0_1, %c0_2, %c0_3] : memref<1x36x256xbf16, #tpu.memory_space<vmem>>, vector<1x36x256xbf16>
    %2 = vector.shape_cast %1 : vector<1x36x256xbf16> to vector<36x256xbf16>
    %cst = arith.constant dense<0.000000e+00> : vector<128x256xf32>
    %3 = tpu.matmul %0, %2, %cst {dimension_numbers = #tpu.dot_dimension_numbers<[1], [0], [0], [1], [0, 0, 1, 1], [], []>} : vector<128x36xbf16>, vector<36x256xbf16>, vector<128x256xf32> -> vector<128x256xf32>
    %4 = vector.extract_strided_slice %3 {offsets = [0, 0], sizes = [8, 256], strides = [1, 1]} : vector<128x256xf32> to vector<8x256xf32>
    %5 = arith.truncf %4 : vector<8x256xf32> to vector<8x256xbf16>
    %c0_4 = arith.constant 0 : index
    %c0_5 = arith.constant 0 : index
    %c0_6 = arith.constant 0 : index
    %6 = vector.load %arg4[%c0_4, %c0_5, %c0_6] : memref<1x8x256xbf16, #tpu.memory_space<vmem>>, vector<1x8x256xbf16>
    %7 = vector.shape_cast %6 : vector<1x8x256xbf16> to vector<8x256xbf16>
    %8 = vector.shape_cast %5 : vector<8x256xbf16> to vector<1x8x256xbf16>
    tpu.vector_store %arg4[%c0_4, %c0_5, %c0_6], %8 {strides = array<i32>} : memref<1x8x256xbf16, #tpu.memory_space<vmem>>, vector<1x8x256xbf16>,
    %9 = arith.truncf %3 : vector<128x256xf32> to vector<128x256xbf16>
    %10 = arith.extf %9 : vector<128x256xbf16> to vector<128x256xf32>
    %cst_7 = arith.constant dense<0.000000e+00> : vector<128xf32>
    %11 = vector.multi_reduction <add>, %10, %cst_7 [1] : vector<128x256xf32> to vector<128xf32>
    %12 = vector.shape_cast %11 : vector<128xf32> to vector<128x1xf32>
    %c0_8 = arith.constant 0 : index
    %c0_9 = arith.constant 0 : index
    %c0_10 = arith.constant 0 : index
    %c0_11 = arith.constant 0 : index
    %13 = vector.load %arg5[%c0_8, %c0_9, %c0_10, %c0_11] : memref<1x1x128x2xf32, #tpu.memory_space<vmem>>, vector<1x1x128x1xf32>
    %14 = vector.shape_cast %13 : vector<1x1x128x1xf32> to vector<128x1xf32>
    %15 = vector.shape_cast %12 : vector<128x1xf32> to vector<1x1x128x1xf32>
    tpu.vector_store %arg5[%c0_8, %c0_9, %c0_10, %c0_11], %15 {strides = array<i32>} : memref<1x1x128x2xf32, #tpu.memory_space<vmem>>, vector<1x1x128x1xf32>,
    %16 = arith.mulf %10, %10 : vector<128x256xf32>
    %cst_12 = arith.constant dense<0.000000e+00> : vector<128xf32>
    %17 = vector.multi_reduction <add>, %16, %cst_12 [1] : vector<128x256xf32> to vector<128xf32>
    %18 = vector.shape_cast %17 : vector<128xf32> to vector<128x1xf32>
    %c0_13 = arith.constant 0 : index
    %c0_14 = arith.constant 0 : index
    %c0_15 = arith.constant 0 : index
    %c1 = arith.constant 1 : index
    %19 = vector.load %arg5[%c0_13, %c0_14, %c0_15, %c1] : memref<1x1x128x2xf32, #tpu.memory_space<vmem>>, vector<1x1x128x1xf32>
    %20 = vector.shape_cast %19 : vector<1x1x128x1xf32> to vector<128x1xf32>
    %21 = vector.shape_cast %18 : vector<128x1xf32> to vector<1x1x128x1xf32>
    tpu.vector_store %arg5[%c0_13, %c0_14, %c0_15, %c1], %21 {strides = array<i32>} : memref<1x1x128x2xf32, #tpu.memory_space<vmem>>, vector<1x1x128x1xf32>,
    return
  }
  func.func @transform_0(%arg0: i32, %arg1: i32) -> (i32, i32, i32) {
    %c0_i32 = arith.constant 0 : i32
    %c0_i32_0 = arith.constant 0 : i32
    return %arg0, %c0_i32, %arg1 : i32, i32, i32
  }
  func.func @transform_1(%arg0: i32, %arg1: i32) -> (i32, i32) {
    %c0_i32 = arith.constant 0 : i32
    %c0_i32_0 = arith.constant 0 : i32
    %c0_i32_1 = arith.constant 0 : i32
    return %c0_i32, %c0_i32_0 : i32, i32
  }
  func.func @transform_2(%arg0: i32, %arg1: i32) -> (i32, i32, i32) {
    %c0_i32 = arith.constant 0 : i32
    %c0_i32_0 = arith.constant 0 : i32
    return %arg0, %c0_i32, %arg1 : i32, i32, i32
  }
  func.func @transform_3(%arg0: i32, %arg1: i32) -> (i32, i32, i32, i32) {
    %c0_i32 = arith.constant 0 : i32
    %c0_i32_0 = arith.constant 0 : i32
    %c0_i32_1 = arith.constant 0 : i32
    return %arg0, %arg1, %c0_i32, %c0_i32_0 : i32, i32, i32, i32
  }
}

</mosaic_0001>

<llo_original>
// kernel: tpu_custom_call.1
$region0: #{tpu_custom_call.1}
  #allocation0 [shape = 'u32[]', space=smem, size = 0x4, offset = 0x4, fixed_abs, tag = 'smem constant byte address 0x4 - core index']
  #allocation1 [shape = 'u32[144,128]{1,0:T(1,128)}', space=vmem, size = 0x12000, scoped, tag = 'internal scratch']
  %s0 = inlined_call_operand.vmem [shape: bf16[2,36,256], index: 0, kind: input, shape index: {}]
  %s1 = inlined_call_operand.vmem [shape: bf16[128,36], index: 1, kind: input, shape index: {}]
  %s2 = inlined_call_operand.hbm [shape: bf16[2,8,256], index: 2, kind: output, shape index: {0}]
  %s3 = inlined_call_operand.vmem [shape: f32[2,1,128,2], index: 3, kind: output, shape index: {1}]
  %4 = xla_tuple %s2, %s3
  %s5 = sld [smem:[#allocation0]]
  $region49: #{tpu_custom_call.1} parent=0
    _
  %s7 = ssub.s32 1, %s5
  %s8 = scalar_select 0, %s7, %s5
  $region1: #{tpu_custom_call.1} parent=0
    #allocation2 [shape = 'u8[8192]{0}', space=vmem, size = 0x2000, scoped, tag = 'output window, operand 0']
    #allocation3 [shape = 's32[2]{0}', space=sflag, size = 0x8, scoped, tag = 'scoped memory for tpu_custom_call.1']
    %9 = vsyncpa [#allocation3], 0
    %s10 = scalar_lea.sflag [#allocation3], 1
    %11 = vsyncpa %s10, 0
    loop: start=0, step=1, limit=4
    $region2: #{tpu_custom_call.1} parent=1 // loop_pre_header
      _
    $region3: #{tpu_custom_call.1} parent=1 // loop_header
      %s13 = sphi 0, %s17
      %p14 = scmp.ge.s32.totalorder %s13, 4
      %s20 = sphi 0, %s32
      %s21 = sphi 0, %s28
      %s22 = sphi 0, %s20
      %s23 = sphi 0, %s21
      %s24 = sphi 0, %s22
      %s25 = sphi 0, %s23
      %s37 = sphi 0, %s39
      %s40 = sphi 0, %s37
      %s41 = sphi 0, %s40
      %s57 = sphi 0, %s41
      %s61 = sphi 0, %s61
      %s63 = sphi 0, %s61
      %s64 = sphi 0, %s63
      %s78 = sphi 0, %s64
      %s86 = sphi 0, %s88
      %s89 = sphi 0, %s86
      %s90 = sphi 0, %s89
      %s106 = sphi 0, %s90
      %s114 = sphi 0, %s116
      %s117 = sphi 0, %s114
      %s118 = sphi 0, %s117
      %s134 = sphi 0, %s118
    $region4: #{tpu_custom_call.1} parent=1 // loop_header_branch
      %16 = sbr.rel (%p14) target = $region8
    $region5: #{tpu_custom_call.1} parent=1 // loop_body
      %s18 = ssub.s32 %s13, 1
      %s19 = ssub.s32 %s13, 2
      %s26 = sadd.s32 1, %s21
      %p27 = scmp.ge.s32.totalorder %s26, 1
      %s28 = scalar_select %p27, 0, %s26
      %s29 = sadd.s32 1, %s20
      %s30 = scalar_select %p27, %s29, %s20
      %p31 = scmp.ge.s32.totalorder %s30, 2
      %s32 = scalar_select %p31, 0, %s30
      %s33 = ssub.s32 %s20, %s32
      %s34 = ssub.s32 %s21, %s28
      %s35 = sor.u32 %s33, %s34
      %p36 = scmp.eq.s32.totalorder %s35, 0
      %s38 = sadd.s32 %s37, 1
      %s39 = scalar_select %p36, %s37, %s38
      %p42 = pneg %p36
      %p43 = scmp.eq.s32.totalorder %s13, 1
      %p44 = por %p42, %p43
      %p45 = scmp.ne.s32.totalorder %s37, %s40
      %p46 = scmp.eq.s32.totalorder %s13, 0
      %p47 = por %p45, %p46
      %p48 = scmp.ne.s32.totalorder %s37, %s40
      %p49 = scmp.eq.s32.totalorder %s18, 1
      %p50 = por %p48, %p49
      %p51 = scmp.ne.s32.totalorder %s40, %s41
      %p52 = scmp.eq.s32.totalorder %s18, 0
      %p53 = por %p51, %p52
      %p54 = scmp.ne.s32.totalorder %s40, %s41
      %p55 = scmp.eq.s32.totalorder %s19, 1
      %p56 = por %p54, %p55
      %p58 = scmp.ne.s32.totalorder %s41, %s57
      %p59 = scmp.eq.s32.totalorder %s19, 0
      %p60 = por %p58, %p59
      %s62 = sadd.s32 %s61, 1
      %p65 = scmp.eq.s32.totalorder %s13, 1
      %p66 = scmp.ne.s32.totalorder %s61, %s63
      %p67 = scmp.eq.s32.totalorder %s13, 0
      %p68 = por %p66, %p67
      %p69 = scmp.ne.s32.totalorder %s61, %s63
      %p70 = scmp.eq.s32.totalorder %s18, 1
      %p71 = por %p69, %p70
      %p72 = scmp.ne.s32.totalorder %s63, %s64
      %p73 = scmp.eq.s32.totalorder %s18, 0
      %p74 = por %p72, %p73
      %p75 = scmp.ne.s32.totalorder %s63, %s64
      %p76 = scmp.eq.s32.totalorder %s19, 1
      %p77 = por %p75, %p76
      %p79 = scmp.ne.s32.totalorder %s64, %s78
      %p80 = scmp.eq.s32.totalorder %s19, 0
      %p81 = por %p79, %p80
      %s82 = ssub.s32 %s20, %s32
      %s83 = ssub.s32 %s21, %s28
      %s84 = sor.u32 %s82, %s83
      %p85 = scmp.eq.s32.totalorder %s84, 0
      %s87 = sadd.s32 %s86, 1
      %s88 = scalar_select %p85, %s86, %s87
      %p91 = pneg %p85
      %p92 = scmp.eq.s32.totalorder %s13, 1
      %p93 = por %p91, %p92
      %p94 = scmp.ne.s32.totalorder %s86, %s89
      %p95 = scmp.eq.s32.totalorder %s13, 0
      %p96 = por %p94, %p95
      %p97 = scmp.ne.s32.totalorder %s86, %s89
      %p98 = scmp.eq.s32.totalorder %s18, 1
      %p99 = por %p97, %p98
      %p100 = scmp.ne.s32.totalorder %s89, %s90
      %p101 = scmp.eq.s32.totalorder %s18, 0
      %p102 = por %p100, %p101
      %p103 = scmp.ne.s32.totalorder %s89, %s90
      %p104 = scmp.eq.s32.totalorder %s19, 1
      %p105 = por %p103, %p104
      %p107 = scmp.ne.s32.totalorder %s90, %s106
      %p108 = scmp.eq.s32.totalorder %s19, 0
      %p109 = por %p107, %p108
      %s110 = ssub.s32 %s20, %s32
      %s111 = ssub.s32 %s21, %s28
      %s112 = sor.u32 %s110, %s111
      %p113 = scmp.eq.s32.totalorder %s112, 0
      %s115 = sadd.s32 %s114, 1
      %s116 = scalar_select %p113, %s114, %s115
      %p119 = pneg %p113
      %p120 = scmp.eq.s32.totalorder %s13, 1
      %p121 = por %p119, %p120
      %p122 = scmp.ne.s32.totalorder %s114, %s117
      %p123 = scmp.eq.s32.totalorder %s13, 0
      %p124 = por %p122, %p123
      %p125 = scmp.ne.s32.totalorder %s114, %s117
      %p126 = scmp.eq.s32.totalorder %s18, 1
      %p127 = por %p125, %p126
      %p128 = scmp.ne.s32.totalorder %s117, %s118
      %p129 = scmp.eq.s32.totalorder %s18, 0
      %p130 = por %p128, %p129
      %p131 = scmp.ne.s32.totalorder %s117, %s118
      %p132 = scmp.eq.s32.totalorder %s19, 1
      %p133 = por %p131, %p132
      %p135 = scmp.ne.s32.totalorder %s118, %s134
      %p136 = scmp.eq.s32.totalorder %s19, 0
      %p137 = por %p135, %p136
      %p138 = scmp.le.s32.totalorder 1, %s13
      %p139 = scmp.lt.s32.totalorder %s13, 3
      %p140 = pnand %p138, %p139
      %p141 = pneg %p140
      // Predicated region
      $region9: #{tpu_custom_call.1} parent=5 // pred_check
        _
      $region10: #{tpu_custom_call.1} parent=5 // pred_check_branch
        %143 = sbr.rel (%p140) target = $region12
      $region11: #{tpu_custom_call.1} parent=5 // pred_region
        %s144 = ssub.s32 %s13, 1
        // Predicated region
        $region13: #{tpu_custom_call.1} parent=11 // pred_check
          %p145 = pneg %p74
        $region14: #{tpu_custom_call.1} parent=11 // pred_check_branch
          %147 = sbr.rel (%p145) target = $region16
        $region15: #{tpu_custom_call.1} parent=11 // pred_region
          _
        $region16: #{tpu_custom_call.1} parent=11 // pred_fallthru
          _
      $region12: #{tpu_custom_call.1} parent=5 // pred_fallthru
        _
      %p148 = scmp.lt.s32.totalorder %s13, 2
      // Predicated region
      $region17: #{tpu_custom_call.1} parent=5 // pred_check
        %p149 = pneg %p148
      $region18: #{tpu_custom_call.1} parent=5 // pred_check_branch
        %151 = sbr.rel (%p149) target = $region20
      $region19: #{tpu_custom_call.1} parent=5 // pred_region
        // Predicated region
        $region21: #{tpu_custom_call.1} parent=19 // pred_check
          %p152 = pneg %p47
        $region22: #{tpu_custom_call.1} parent=19 // pred_check_branch
          %154 = sbr.rel (%p152) target = $region24
        $region23: #{tpu_custom_call.1} parent=19 // pred_region
          %s155 = smul.u32 2, %s21
          %p156 = scmp.lt.s32.totalorder %s20, 1
          %s157 = scalar_select %p156, %s20, 1
          %p158 = scmp.lt.s32.totalorder %s155, 1
          %s159 = scalar_select %p158, %s155, 1
          %s160 = smul.addr %s157, 10
          %s161 = sadd.s32 %s159, %s160
          %s162 = smul.addr %s161, 4
          %s163 = scalar_lea.vmem %s0, %s162
          %s164 = smul.u32 2, %s21
        $region24: #{tpu_custom_call.1} parent=19 // pred_fallthru
          _
      $region20: #{tpu_custom_call.1} parent=5 // pred_fallthru
        _
      %p165 = scmp.le.s32.totalorder 1, %s13
      %p166 = scmp.lt.s32.totalorder %s13, 3
      %p167 = pnand %p165, %p166
      %p168 = pneg %p167
      // Predicated region
      $region25: #{tpu_custom_call.1} parent=5 // pred_check
        _
      $region26: #{tpu_custom_call.1} parent=5 // pred_check_branch
        %170 = sbr.rel (%p167) target = $region28
      $region27: #{tpu_custom_call.1} parent=5 // pred_region
        %s171 = ssub.s32 %s13, 1
        %s172 = smul.u32 2, %s23
        %p173 = scmp.lt.s32.totalorder %s22, 1
        %s174 = scalar_select %p173, %s22, 1
        %p175 = scmp.lt.s32.totalorder %s172, 1
        %s176 = scalar_select %p175, %s172, 1
        %s177 = smul.addr %s174, 10
        %s178 = sadd.s32 %s176, %s177
        %s179 = smul.addr %s178, 4
        %s180 = scalar_lea.vmem %s0, %s179
        %p181 = pneg %p53
        %p182 = pneg %p50
        %p183 = pneg %p74
        %p184 = pneg %p71
        %p185 = pneg %p102
        %p186 = pneg %p99
        %s187 = sand.u32 %s89, 1
        %s188 = scalar_lea.sflag [#allocation3], %s187
        %s189 = sand.u32 %s89, 1
        %s190 = smul.addr %s189, 8
        %s191 = scalar_lea.vmem [#allocation2], %s190
        %p192 = pneg %p130
        %p193 = pneg %p127
        %p194 = scmp.lt.s32.totalorder %s22, 1
        %s195 = scalar_select %p194, %s22, 1
        %p196 = scmp.lt.s32.totalorder %s23, 0
        %s197 = scalar_select %p196, %s23, 0
        %s198 = smul.addr %s197, 16
        %s199 = smul.addr %s195, 16
        %s200 = sadd.s32 %s198, %s199
        %s201 = smul.addr %s200, 8
        %s202 = scalar_lea.vmem %s3, %s201
        %s203 = smul.u32 2, %s23
        %p204 = scmp.lt.s32.totalorder %s22, 1
        %s205 = scalar_select %p204, %s22, 1
        %p206 = scmp.lt.s32.totalorder %s203, 1
        %s207 = scalar_select %p206, %s203, 1
        %s208 = smul.addr %s205, 10
        %s209 = sadd.s32 %s207, %s208
        %s210 = smul.addr %s209, 4
        %s211 = scalar_lea.vmem %s0, %s210
        %s212 = smul.u32 2, %s23
        %s213 = smul.u32 2, %s23
        %p214 = scmp.lt.s32.totalorder %s22, 1
        %s215 = scalar_select %p214, %s22, 1
        %p216 = scmp.lt.s32.totalorder %s23, 0
        %s217 = scalar_select %p216, %s23, 0
        %s218 = smul.addr %s217, 16
        %s219 = smul.addr %s215, 16
        %s220 = sadd.s32 %s218, %s219
        %s221 = smul.addr %s220, 8
        %s222 = scalar_lea.vmem %s3, %s221
        %v224 = vld [vmem:[%s1] sm:$0xf]
        %v225 = vld [vmem:[%s1 + $0x4] sm:$0xf]
        %v226 = vld [vmem:[%s1 + $0x8] sm:$0xf]
        %v227 = vld [vmem:[%s1 + $0xc] sm:$0xf]
        %v228 = vld [vmem:[%s1 + $0x10] sm:$0xf]
        %v229 = vld [vmem:[%s1 + $0x14] sm:$0xf]
        %v230 = vld [vmem:[%s1 + $0x18] sm:$0xf]
        %v231 = vld [vmem:[%s1 + $0x1c] sm:$0xf]
        %v232 = vld [vmem:[%s1 + $0x20] sm:$0xf]
        %v233 = vld [vmem:[%s1 + $0x24] sm:$0xf]
        %v234 = vld [vmem:[%s1 + $0x28] sm:$0xf]
        %v235 = vld [vmem:[%s1 + $0x2c] sm:$0xf]
        %v236 = vld [vmem:[%s1 + $0x30] sm:$0xf]
        %v237 = vld [vmem:[%s1 + $0x34] sm:$0xf]
        %v238 = vld [vmem:[%s1 + $0x38] sm:$0xf]
        %v239 = vld [vmem:[%s1 + $0x3c] sm:$0xf]
        %v240 = vld [vmem:[%s211] sm:$0xff]
        %v241 = vld [vmem:[%s211 + $0x8] sm:$0xff]
        %v242 = vld [vmem:[%s211 + $0x10] sm:$0xff]
        %v243 = vld [vmem:[%s211 + $0x18] sm:$0xff]
        %v244 = vld [vmem:[%s211 + $0x20] sm:$0x33]
        %v261 = vunpack.c.l.b16 %v224
        %v262 = vunpack.c.l.b16 %v225
        %v263 = vunpack.c.l.b16 %v226
        %v264 = vunpack.c.l.b16 %v227
        %v265 = vunpack.c.l.b16 %v228
        %v266 = vunpack.c.l.b16 %v229
        %v267 = vunpack.c.l.b16 %v230
        %v268 = vunpack.c.l.b16 %v231
        %v269 = vunpack.c.l.b16 %v232
        %v270 = vunpack.c.l.b16 %v233
        %v271 = vunpack.c.l.b16 %v234
        %v272 = vunpack.c.l.b16 %v235
        %v273 = vunpack.c.l.b16 %v236
        %v274 = vunpack.c.l.b16 %v237
        %v275 = vunpack.c.l.b16 %v238
        %v276 = vunpack.c.l.b16 %v239
        %v277 = vpack.c.b16 %v262, %v261
        %v278 = vpack.c.b16 %v264, %v263
        %v279 = vpack.c.b16 %v266, %v265
        %v280 = vpack.c.b16 %v268, %v267
        %v281 = vpack.c.b16 %v270, %v269
        %v282 = vpack.c.b16 %v272, %v271
        %v283 = vpack.c.b16 %v274, %v273
        %v284 = vpack.c.b16 %v276, %v275
        %v290 = vunpack.c.l.b16 %v240
        %v291 = vunpack.c.h.b16 %v240
        %v292 = vunpack.c.l.b16 %v241
        %v293 = vunpack.c.h.b16 %v241
        %v294 = vunpack.c.l.b16 %v242
        %v295 = vunpack.c.h.b16 %v242
        %v296 = vunpack.c.l.b16 %v243
        %v297 = vunpack.c.h.b16 %v243
        %v298 = vunpack.c.l.b16 %v244
        %v299 = vunpack.c.h.b16 %v244
        %v300 = vpack.c.b16 %v292, %v290
        %v301 = vpack.c.b16 %v293, %v291
        %v302 = vpack.c.b16 %v296, %v294
        %v303 = vpack.c.b16 %v297, %v295
        %v304 = vpack.c.b16 %v298, %v298
        %v305 = vpack.c.b16 %v299, %v299
        %vm310 = vcmask 293888
        %v312 = vsel %vm310, %v277, 0
        %v315 = vsel %vm310, %v278, 0
        %v318 = vsel %vm310, %v279, 0
        %v321 = vsel %vm310, %v280, 0
        %v324 = vsel %vm310, %v281, 0
        %v327 = vsel %vm310, %v282, 0
        %v330 = vsel %vm310, %v283, 0
        %v333 = vsel %vm310, %v284, 0
        %vm335 = vcmask 1041408
        %v337 = vsel %vm335, %v304, 0
        %v340 = vsel %vm335, %v305, 0
        %342 = vmatprep.subr.bf16.mxu0 %v301
        %343 = vmatpush1.bf16.msra.mxu0 %v300
        %344 = vmatprep.subr.bf16.mxu0 %v303
        %345 = vmatpush1.bf16.msra.mxu0 %v302
        %346 = vmatprep.subr.bf16.mxu0 %v340
        %347 = vmatpush1.bf16.msra.mxu0 %v337
        %348 = vmatprep.subr.bf16.mxu0 0
        %349 = vmatpush1.bf16.msra.mxu0 0
        %350 = vmatprep.subr.bf16.mxu0 0
        %351 = vmatpush1.bf16.msra.mxu0 0
        %352 = vmatprep.subr.bf16.mxu0 0
        %353 = vmatpush1.bf16.msra.mxu0 0
        %354 = vmatprep.subr.bf16.mxu0 0
        %355 = vmatpush1.bf16.msra.mxu0 0
        %356 = vmatprep.subr.bf16.mxu0 0
        %357 = vmatpush1.bf16.msra.mxu0 0
        %358 = vmatprep.subr.bf16.mxu0 0
        %359 = vmatpush1.bf16.msra.mxu0 0
        %360 = vmatprep.subr.bf16.mxu0 0
        %361 = vmatpush1.bf16.msra.mxu0 0
        %362 = vmatprep.subr.bf16.mxu0 0
        %363 = vmatpush1.bf16.msra.mxu0 0
        %364 = vmatprep.subr.bf16.mxu0 0
        %365 = vmatpush1.bf16.msra.mxu0 0
        %366 = vmatprep.subr.bf16.mxu0 0
        %367 = vmatpush1.bf16.msra.mxu0 0
        %368 = vmatprep.subr.bf16.mxu0 0
        %369 = vmatpush1.bf16.msra.mxu0 0
        %370 = vmatprep.subr.bf16.mxu0 0
        %371 = vmatpush1.bf16.msra.mxu0 0
        %372 = vmatprep.subr.bf16.mxu0 0
        %373 = vmatpush1.bf16.msra.mxu0 0
        %374 = vmatprep.mubr.bf16.mxu0 0
        %375 = vmatmul.mubr.bf16.gmra.mrb[0].mxu0 %v312
        %v376 = vpop.f32.mrb[0].mxu0
        %v377 = vadd.f32 0.0, %v376
        %v378 = vpop.f32.mrb[0].mxu0
        %v379 = vadd.f32 0.0, %v378
        %v380 = vpop.f32.mrb[0].mxu0
        %v381 = vadd.f32 0.0, %v380
        %v382 = vpop.f32.mrb[0].mxu0
        %v383 = vadd.f32 0.0, %v382
        %384 = vmatprep.mubr.bf16.mxu0 0
        %385 = vmatmul.mubr.bf16.gmra.mrb[0].mxu0 %v315
        %v386 = vpop.f32.mrb[0].mxu0
        %v387 = vadd.f32 0.0, %v386
        %v388 = vpop.f32.mrb[0].mxu0
        %v389 = vadd.f32 0.0, %v388
        %v390 = vpop.f32.mrb[0].mxu0
        %v391 = vadd.f32 0.0, %v390
        %v392 = vpop.f32.mrb[0].mxu0
        %v393 = vadd.f32 0.0, %v392
        %394 = vmatprep.mubr.bf16.mxu0 0
        %395 = vmatmul.mubr.bf16.gmra.mrb[0].mxu0 %v318
        %v396 = vpop.f32.mrb[0].mxu0
        %v397 = vadd.f32 0.0, %v396
        %v398 = vpop.f32.mrb[0].mxu0
        %v399 = vadd.f32 0.0, %v398
        %v400 = vpop.f32.mrb[0].mxu0
        %v401 = vadd.f32 0.0, %v400
        %v402 = vpop.f32.mrb[0].mxu0
        %v403 = vadd.f32 0.0, %v402
        %404 = vmatprep.mubr.bf16.mxu0 0
        %405 = vmatmul.mubr.bf16.gmra.mrb[0].mxu0 %v321
        %v406 = vpop.f32.mrb[0].mxu0
        %v407 = vadd.f32 0.0, %v406
        %v408 = vpop.f32.mrb[0].mxu0
        %v409 = vadd.f32 0.0, %v408
        %v410 = vpop.f32.mrb[0].mxu0
        %v411 = vadd.f32 0.0, %v410
        %v412 = vpop.f32.mrb[0].mxu0
        %v413 = vadd.f32 0.0, %v412
        %414 = vmatprep.mubr.bf16.mxu0 0
        %415 = vmatmul.mubr.bf16.gmra.mrb[0].mxu0 %v324
        %v416 = vpop.f32.mrb[0].mxu0
        %v417 = vadd.f32 0.0, %v416
        %v418 = vpop.f32.mrb[0].mxu0
        %v419 = vadd.f32 0.0, %v418
        %v420 = vpop.f32.mrb[0].mxu0
        %v421 = vadd.f32 0.0, %v420
        %v422 = vpop.f32.mrb[0].mxu0
        %v423 = vadd.f32 0.0, %v422
        %424 = vmatprep.mubr.bf16.mxu0 0
        %425 = vmatmul.mubr.bf16.gmra.mrb[0].mxu0 %v327
        %v426 = vpop.f32.mrb[0].mxu0
        %v427 = vadd.f32 0.0, %v426
        %v428 = vpop.f32.mrb[0].mxu0
        %v429 = vadd.f32 0.0, %v428
        %v430 = vpop.f32.mrb[0].mxu0
        %v431 = vadd.f32 0.0, %v430
        %v432 = vpop.f32.mrb[0].mxu0
        %v433 = vadd.f32 0.0, %v432
        %434 = vmatprep.mubr.bf16.mxu0 0
        %435 = vmatmul.mubr.bf16.gmra.mrb[0].mxu0 %v330
        %v436 = vpop.f32.mrb[0].mxu0
        %v437 = vadd.f32 0.0, %v436
        %v438 = vpop.f32.mrb[0].mxu0
        %v439 = vadd.f32 0.0, %v438
        %v440 = vpop.f32.mrb[0].mxu0
        %v441 = vadd.f32 0.0, %v440
        %v442 = vpop.f32.mrb[0].mxu0
        %v443 = vadd.f32 0.0, %v442
        %444 = vmatprep.mubr.bf16.mxu0 0
        %445 = vmatmul.mubr.bf16.gmra.mrb[0].mxu0 %v333
        %v446 = vpop.f32.mrb[0].mxu0
        %v447 = vadd.f32 0.0, %v446
        %v448 = vpop.f32.mrb[0].mxu0
        %v449 = vadd.f32 0.0, %v448
        %v450 = vpop.f32.mrb[0].mxu0
        %v451 = vadd.f32 0.0, %v450
        %v452 = vpop.f32.mrb[0].mxu0
        %v453 = vadd.f32 0.0, %v452
        %454 = vdwg.mxu0
        %v455 = vpack.c.bf16 %v377, %v377
        %v456 = vpack.c.bf16 %v379, %v379
        %v459 = vunpack.c.l.b16 %v455
        %v460 = vunpack.c.l.b16 %v456
        %v461 = vpack.c.b16 %v460, %v459
        %463 = vst [vmem:[%s191] sm:$0xff] %v461
        %v464 = vpack.c.bf16 %v381, %v377
        %v465 = vpack.c.bf16 %v383, %v379
        %v466 = vpack.c.bf16 %v391, %v387
        %v467 = vpack.c.bf16 %v393, %v389
        %v468 = vpack.c.bf16 %v401, %v397
        %v469 = vpack.c.bf16 %v403, %v399
        %v470 = vpack.c.bf16 %v411, %v407
        %v471 = vpack.c.bf16 %v413, %v409
        %v472 = vpack.c.bf16 %v421, %v417
        %v473 = vpack.c.bf16 %v423, %v419
        %v474 = vpack.c.bf16 %v431, %v427
        %v475 = vpack.c.bf16 %v433, %v429
        %v476 = vpack.c.bf16 %v441, %v437
        %v477 = vpack.c.bf16 %v443, %v439
        %v478 = vpack.c.bf16 %v451, %v447
        %v479 = vpack.c.bf16 %v453, %v449
        %v480 = vunpack.c.l.bf16 %v464
        %v481 = vunpack.c.l.bf16 %v465
        %v482 = vunpack.c.h.bf16 %v464
        %v483 = vunpack.c.h.bf16 %v465
        %v484 = vunpack.c.l.bf16 %v466
        %v485 = vunpack.c.l.bf16 %v467
        %v486 = vunpack.c.h.bf16 %v466
        %v487 = vunpack.c.h.bf16 %v467
        %v488 = vunpack.c.l.bf16 %v468
        %v489 = vunpack.c.l.bf16 %v469
        %v490 = vunpack.c.h.bf16 %v468
        %v491 = vunpack.c.h.bf16 %v469
        %v492 = vunpack.c.l.bf16 %v470
        %v493 = vunpack.c.l.bf16 %v471
        %v494 = vunpack.c.h.bf16 %v470
        %v495 = vunpack.c.h.bf16 %v471
        %v496 = vunpack.c.l.bf16 %v472
        %v497 = vunpack.c.l.bf16 %v473
        %v498 = vunpack.c.h.bf16 %v472
        %v499 = vunpack.c.h.bf16 %v473
        %v500 = vunpack.c.l.bf16 %v474
        %v501 = vunpack.c.l.bf16 %v475
        %v502 = vunpack.c.h.bf16 %v474
        %v503 = vunpack.c.h.bf16 %v475
        %v504 = vunpack.c.l.bf16 %v476
        %v505 = vunpack.c.l.bf16 %v477
        %v506 = vunpack.c.h.bf16 %v476
        %v507 = vunpack.c.h.bf16 %v477
        %v508 = vunpack.c.l.bf16 %v478
        %v509 = vunpack.c.l.bf16 %v479
        %v510 = vunpack.c.h.bf16 %v478
        %v511 = vunpack.c.h.bf16 %v479
        %v512 = vadd.f32 %v480, %v481
        %513 = vadd.xlane.f32.xlu0 %v512
        %v514 = vpop.xlane.xlu0 %513
        %v515 = vadd.f32 %v482, %v483
        %516 = vadd.xlane.f32.xlu0 %v515
        %v517 = vpop.xlane.xlu0 %516
        %v518 = vadd.f32 %v484, %v485
        %519 = vadd.xlane.f32.xlu0 %v518
        %v520 = vpop.xlane.xlu0 %519
        %v521 = vadd.f32 %v486, %v487
        %522 = vadd.xlane.f32.xlu0 %v521
        %v523 = vpop.xlane.xlu0 %522
        %v524 = vadd.f32 %v488, %v489
        %525 = vadd.xlane.f32.xlu0 %v524
        %v526 = vpop.xlane.xlu0 %525
        %v527 = vadd.f32 %v490, %v491
        %528 = vadd.xlane.f32.xlu0 %v527
        %v529 = vpop.xlane.xlu0 %528
        %v530 = vadd.f32 %v492, %v493
        %531 = vadd.xlane.f32.xlu0 %v530
        %v532 = vpop.xlane.xlu0 %531
        %v533 = vadd.f32 %v494, %v495
        %534 = vadd.xlane.f32.xlu0 %v533
        %v535 = vpop.xlane.xlu0 %534
        %v536 = vadd.f32 %v496, %v497
        %537 = vadd.xlane.f32.xlu0 %v536
        %v538 = vpop.xlane.xlu0 %537
        %v539 = vadd.f32 %v498, %v499
        %540 = vadd.xlane.f32.xlu0 %v539
        %v541 = vpop.xlane.xlu0 %540
        %v542 = vadd.f32 %v500, %v501
        %543 = vadd.xlane.f32.xlu0 %v542
        %v544 = vpop.xlane.xlu0 %543
        %v545 = vadd.f32 %v502, %v503
        %546 = vadd.xlane.f32.xlu0 %v545
        %v547 = vpop.xlane.xlu0 %546
        %v548 = vadd.f32 %v504, %v505
        %549 = vadd.xlane.f32.xlu0 %v548
        %v550 = vpop.xlane.xlu0 %549
        %v551 = vadd.f32 %v506, %v507
        %552 = vadd.xlane.f32.xlu0 %v551
        %v553 = vpop.xlane.xlu0 %552
        %v554 = vadd.f32 %v508, %v509
        %555 = vadd.xlane.f32.xlu0 %v554
        %v556 = vpop.xlane.xlu0 %555
        %v557 = vadd.f32 %v510, %v511
        %558 = vadd.xlane.f32.xlu0 %v557
        %v559 = vpop.xlane.xlu0 %558
        %vm560 = vcmask 7168
        %561 = vst.msk [vmem:[%s222] sm:$0xff] %vm560, %v514
        %562 = vst.msk [vmem:[%s222 + $0x8] sm:$0xff] %vm560, %v517
        %563 = vst.msk [vmem:[%s222 + $0x10] sm:$0xff] %vm560, %v520
        %564 = vst.msk [vmem:[%s222 + $0x18] sm:$0xff] %vm560, %v523
        %565 = vst.msk [vmem:[%s222 + $0x20] sm:$0xff] %vm560, %v526
        %566 = vst.msk [vmem:[%s222 + $0x28] sm:$0xff] %vm560, %v529
        %567 = vst.msk [vmem:[%s222 + $0x30] sm:$0xff] %vm560, %v532
        %568 = vst.msk [vmem:[%s222 + $0x38] sm:$0xff] %vm560, %v535
        %569 = vst.msk [vmem:[%s222 + $0x40] sm:$0xff] %vm560, %v538
        %570 = vst.msk [vmem:[%s222 + $0x48] sm:$0xff] %vm560, %v541
        %571 = vst.msk [vmem:[%s222 + $0x50] sm:$0xff] %vm560, %v544
        %572 = vst.msk [vmem:[%s222 + $0x58] sm:$0xff] %vm560, %v547
        %573 = vst.msk [vmem:[%s222 + $0x60] sm:$0xff] %vm560, %v550
        %574 = vst.msk [vmem:[%s222 + $0x68] sm:$0xff] %vm560, %v553
        %575 = vst.msk [vmem:[%s222 + $0x70] sm:$0xff] %vm560, %v556
        %576 = vst.msk [vmem:[%s222 + $0x78] sm:$0xff] %vm560, %v559
        %v577 = vmul.f32 %v480, %v480
        %v578 = vmul.f32 %v481, %v481
        %v579 = vmul.f32 %v482, %v482
        %v580 = vmul.f32 %v483, %v483
        %v581 = vmul.f32 %v484, %v484
        %v582 = vmul.f32 %v485, %v485
        %v583 = vmul.f32 %v486, %v486
        %v584 = vmul.f32 %v487, %v487
        %v585 = vmul.f32 %v488, %v488
        %v586 = vmul.f32 %v489, %v489
        %v587 = vmul.f32 %v490, %v490
        %v588 = vmul.f32 %v491, %v491
        %v589 = vmul.f32 %v492, %v492
        %v590 = vmul.f32 %v493, %v493
        %v591 = vmul.f32 %v494, %v494
        %v592 = vmul.f32 %v495, %v495
        %v593 = vmul.f32 %v496, %v496
        %v594 = vmul.f32 %v497, %v497
        %v595 = vmul.f32 %v498, %v498
        %v596 = vmul.f32 %v499, %v499
        %v597 = vmul.f32 %v500, %v500
        %v598 = vmul.f32 %v501, %v501
        %v599 = vmul.f32 %v502, %v502
        %v600 = vmul.f32 %v503, %v503
        %v601 = vmul.f32 %v504, %v504
        %v602 = vmul.f32 %v505, %v505
        %v603 = vmul.f32 %v506, %v506
        %v604 = vmul.f32 %v507, %v507
        %v605 = vmul.f32 %v508, %v508
        %v606 = vmul.f32 %v509, %v509
        %v607 = vmul.f32 %v510, %v510
        %v608 = vmul.f32 %v511, %v511
        %v609 = vadd.f32 %v577, %v578
        %610 = vadd.xlane.f32.xlu0 %v609
        %v611 = vpop.xlane.xlu0 %610
        %v612 = vadd.f32 %v579, %v580
        %613 = vadd.xlane.f32.xlu0 %v612
        %v614 = vpop.xlane.xlu0 %613
        %v615 = vadd.f32 %v581, %v582
        %616 = vadd.xlane.f32.xlu0 %v615
        %v617 = vpop.xlane.xlu0 %616
        %v618 = vadd.f32 %v583, %v584
        %619 = vadd.xlane.f32.xlu0 %v618
        %v620 = vpop.xlane.xlu0 %619
        %v621 = vadd.f32 %v585, %v586
        %622 = vadd.xlane.f32.xlu0 %v621
        %v623 = vpop.xlane.xlu0 %622
        %v624 = vadd.f32 %v587, %v588
        %625 = vadd.xlane.f32.xlu0 %v624
        %v626 = vpop.xlane.xlu0 %625
        %v627 = vadd.f32 %v589, %v590
        %628 = vadd.xlane.f32.xlu0 %v627
        %v629 = vpop.xlane.xlu0 %628
        %v630 = vadd.f32 %v591, %v592
        %631 = vadd.xlane.f32.xlu0 %v630
        %v632 = vpop.xlane.xlu0 %631
        %v633 = vadd.f32 %v593, %v594
        %634 = vadd.xlane.f32.xlu0 %v633
        %v635 = vpop.xlane.xlu0 %634
        %v636 = vadd.f32 %v595, %v596
        %637 = vadd.xlane.f32.xlu0 %v636
        %v638 = vpop.xlane.xlu0 %637
        %v639 = vadd.f32 %v597, %v598
        %640 = vadd.xlane.f32.xlu0 %v639
        %v641 = vpop.xlane.xlu0 %640
        %v642 = vadd.f32 %v599, %v600
        %643 = vadd.xlane.f32.xlu0 %v642
        %v644 = vpop.xlane.xlu0 %643
        %v645 = vadd.f32 %v601, %v602
        %646 = vadd.xlane.f32.xlu0 %v645
        %v647 = vpop.xlane.xlu0 %646
        %v648 = vadd.f32 %v603, %v604
        %649 = vadd.xlane.f32.xlu0 %v648
        %v650 = vpop.xlane.xlu0 %649
        %v651 = vadd.f32 %v605, %v606
        %652 = vadd.xlane.f32.xlu0 %v651
        %v653 = vpop.xlane.xlu0 %652
        %v654 = vadd.f32 %v607, %v608
        %655 = vadd.xlane.f32.xlu0 %v654
        %v656 = vpop.xlane.xlu0 %655
        %vm657 = vcmask 15368
        %658 = vst.msk [vmem:[%s222] sm:$0xff] %vm657, %v611
        %659 = vst.msk [vmem:[%s222 + $0x8] sm:$0xff] %vm657, %v614
        %660 = vst.msk [vmem:[%s222 + $0x10] sm:$0xff] %vm657, %v617
        %661 = vst.msk [vmem:[%s222 + $0x18] sm:$0xff] %vm657, %v620
        %662 = vst.msk [vmem:[%s222 + $0x20] sm:$0xff] %vm657, %v623
        %663 = vst.msk [vmem:[%s222 + $0x28] sm:$0xff] %vm657, %v626
        %664 = vst.msk [vmem:[%s222 + $0x30] sm:$0xff] %vm657, %v629
        %665 = vst.msk [vmem:[%s222 + $0x38] sm:$0xff] %vm657, %v632
        %666 = vst.msk [vmem:[%s222 + $0x40] sm:$0xff] %vm657, %v635
        %667 = vst.msk [vmem:[%s222 + $0x48] sm:$0xff] %vm657, %v638
        %668 = vst.msk [vmem:[%s222 + $0x50] sm:$0xff] %vm657, %v641
        %669 = vst.msk [vmem:[%s222 + $0x58] sm:$0xff] %vm657, %v644
        %670 = vst.msk [vmem:[%s222 + $0x60] sm:$0xff] %vm657, %v647
        %671 = vst.msk [vmem:[%s222 + $0x68] sm:$0xff] %vm657, %v650
        %672 = vst.msk [vmem:[%s222 + $0x70] sm:$0xff] %vm657, %v653
        %673 = vst.msk [vmem:[%s222 + $0x78] sm:$0xff] %vm657, %v656
        %s674 = sand.u32 %s89, 1
        %s675 = scalar_lea.sflag [#allocation3], %s674
        %s676 = sand.u32 %s89, 1
        %s677 = smul.addr %s676, 8
        %s678 = scalar_lea.vmem [#allocation2], %s677
        %p679 = scmp.lt.s32.totalorder %s22, 1
        %s680 = scalar_select %p679, %s22, 1
        %p681 = scmp.lt.s32.totalorder %s23, 0
        %s682 = scalar_select %p681, %s23, 0
        %s683 = smul.addr %s682, 16
        %s684 = smul.addr %s680, 16
        %s685 = sadd.s32 %s683, %s684
        %s686 = smul.addr %s685, 8
        %s687 = scalar_lea.vmem %s3, %s686
        // Predicated region
        $region29: #{tpu_custom_call.1} parent=27 // pred_check
          %p688 = pneg %p99
        $region30: #{tpu_custom_call.1} parent=27 // pred_check_branch
          %690 = sbr.rel (%p688) target = $region32
        $region31: #{tpu_custom_call.1} parent=27 // pred_region
          %s691 = smul.u32 2, %s23
          %s693 = ssub.s32 128, 128
          %694 = vsyncadd %s675, %s693
          %s695 = smul.addr %s22, 2
          %s696 = sadd.s32 %s691, %s695
          %s697 = smul.addr %s696, 64
          %s698 = scalar_lea.hbm %s2, %s697
          %s700 = sshll.u32 %s678, 4
          %s701 = int_to_ptr.vmem [resolvable:$true] %s700
          %703 = dma.vmem_to_hbm [thread:$0]  %s701, 128, %s698, %s675
        $region32: #{tpu_custom_call.1} parent=27 // pred_fallthru
          _
        // Predicated region
        $region33: #{tpu_custom_call.1} parent=27 // pred_check
          %p704 = pneg %p127
        $region34: #{tpu_custom_call.1} parent=27 // pred_check_branch
          %706 = sbr.rel (%p704) target = $region36
        $region35: #{tpu_custom_call.1} parent=27 // pred_region
          _
        $region36: #{tpu_custom_call.1} parent=27 // pred_fallthru
          _
      $region28: #{tpu_custom_call.1} parent=5 // pred_fallthru
        _
      %p707 = scmp.le.s32.totalorder 2, %s13
      // Predicated region
      $region37: #{tpu_custom_call.1} parent=5 // pred_check
        %p708 = pneg %p707
      $region38: #{tpu_custom_call.1} parent=5 // pred_check_branch
        %710 = sbr.rel (%p708) target = $region40
      $region39: #{tpu_custom_call.1} parent=5 // pred_region
        %s711 = ssub.s32 %s13, 2
        // Predicated region
        $region41: #{tpu_custom_call.1} parent=39 // pred_check
          %p712 = pneg %p105
        $region42: #{tpu_custom_call.1} parent=39 // pred_check_branch
          %714 = sbr.rel (%p712) target = $region44
        $region43: #{tpu_custom_call.1} parent=39 // pred_region
          %s715 = sand.u32 %s90, 1
          %s716 = scalar_lea.sflag [#allocation3], %s715
          %s717 = sand.u32 %s90, 1
          %s718 = smul.addr %s717, 8
          %s719 = scalar_lea.vmem [#allocation2], %s718
          %720 = dma.done %s716, 128
        $region44: #{tpu_custom_call.1} parent=39 // pred_fallthru
          _
        // Predicated region
        $region45: #{tpu_custom_call.1} parent=39 // pred_check
          %p721 = pneg %p133
        $region46: #{tpu_custom_call.1} parent=39 // pred_check_branch
          %723 = sbr.rel (%p721) target = $region48
        $region47: #{tpu_custom_call.1} parent=39 // pred_region
          %p724 = scmp.lt.s32.totalorder %s24, 1
          %s725 = scalar_select %p724, %s24, 1
          %p726 = scmp.lt.s32.totalorder %s25, 0
          %s727 = scalar_select %p726, %s25, 0
          %s728 = smul.addr %s727, 16
          %s729 = smul.addr %s725, 16
          %s730 = sadd.s32 %s728, %s729
          %s731 = smul.addr %s730, 8
          %s732 = scalar_lea.vmem %s3, %s731
        $region48: #{tpu_custom_call.1} parent=39 // pred_fallthru
          _
      $region40: #{tpu_custom_call.1} parent=5 // pred_fallthru
        _
    $region6: #{tpu_custom_call.1} parent=1 // loop_footer
      %s17 = sadd.s32 1, %s13
    $region7: #{tpu_custom_call.1} parent=1 // loop_footer_branch
      %12 = sbr.rel target = $region3
    $region8: #{tpu_custom_call.1} parent=1 // loop_exit
      _
    %733 = vsyncpa [#allocation3], 1
    %s734 = scalar_lea.sflag [#allocation3], 1
    %735 = vsyncpa %s734, 1

</llo_original>
